<compile_context>
chip_gen: v6e
topology: v6e:2x2x1
jax: 0.10.0
libtpu: 0.0.40
codegen_flags: <defaults>
</compile_context>

<pallas_src>
import jax
import jax.numpy as jnp
from jax.experimental import pallas as pl
from jax.experimental.pallas import tpu as pltpu


def _make_kernel(nt, n_total, n_steps):
    """Kernel over one (gb, nt, D) feats block; grid = (graph blocks, node tiles)."""
    mask_tail = n_steps > 1  # only the tiled-N path can read past the node extent

    def kernel(feats_ref, w_ref, b_ref, hsum_ref, aw_ref, acc_ref):
        n_idx = pl.program_id(1)

        @pl.when(n_idx == 0)
        def _init():
            acc_ref[...] = jnp.zeros_like(acc_ref)

        x = feats_ref[...]                               # (gb, nt, D), native dtype
        w_row = w_ref[...]                               # (1, D),      native dtype
        b = b_ref[0, 0]                                  # f32 scalar from SMEM

        # Per-node pre-sigmoid score: VPU multiply + f32-accumulated lane reduce
        # (no degenerate (N,D)x(D,1) MXU matvec, no f32 copy of the block).
        scores = jnp.sum(x * w_row[jnp.newaxis, :, :], axis=-1,
                         dtype=jnp.float32) + b          # (gb, nt) f32
        gates = jax.nn.sigmoid(scores)                   # f32 (EUP)

        # Gated contribution; product stays in the input dtype, node reduction in f32.
        contrib = gates.astype(x.dtype)[:, :, None] * x  # (gb, nt, D)
        if mask_tail:
            node_ids = n_idx * nt + jax.lax.broadcasted_iota(jnp.int32, scores.shape, 1)
            contrib = jnp.where((node_ids < n_total)[:, :, None], contrib, 0)
        acc_ref[...] += jnp.sum(contrib, axis=1, dtype=jnp.float32)   # (gb, D)

        aw_ref[...] = scores.astype(aw_ref.dtype)

        @pl.when(n_idx == n_steps - 1)
        def _finalize():
            hsum_ref[...] = acc_ref[...].astype(hsum_ref.dtype)

    return kernel


def _choose_tiling(G, N, D, itemsize, *, feats_block_budget=2 << 20, num_cores=2):
    """Pick (graphs-per-block, nodes-per-tile, node-tile steps).

    Targets ~1-2 MiB feats blocks, >=4 graph-axis steps per TensorCore when G allows,
    an even graph-axis step count (v7x megacore balance), and a bounded per-block
    footprint for very large graphs by tiling the node dimension."""
    bytes_per_node = max(D * itemsize, 1)

    # Node tile: whole graph if a minimal (8, N, D) block fits the budget; otherwise
    # tile nodes in multiples of 128 (lane-aligned; keeps the (gb, nt) score-output
    # block legal under the (8,128) constraint).
    if N <= 128 or 8 * N * bytes_per_node <= feats_block_budget:
        nt = N
    else:
        nt = (feats_block_budget // (8 * bytes_per_node)) // 128 * 128
        nt = max(128, min(nt, (N // 128) * 128))
    n_steps = pl.cdiv(N, nt)

    # Graph tile from the per-block byte budget.
    bytes_per_graph_tile = max(nt * bytes_per_node, 1)
    budget_gb = max(8, (feats_block_budget // bytes_per_graph_tile) // 8 * 8)
    gb = budget_gb

    # Keep enough graph-axis steps for DMA/compute overlap (8 total covers the
    # >=4-per-core target on v7x's 2 TensorCores; extra depth is harmless on v5e/v6e).
    min_g_steps = 4 * num_cores
    desired_steps = max(1, min(min_g_steps, pl.cdiv(G, 8)))
    gb = min(gb, max(8, (G // desired_steps) // 8 * 8))

    if G < 8:
        return G, nt, n_steps

    # Prefer an even number of graph-axis steps (balances v7x's 2 cores), but never
    # at the cost of dropping below the pipeline-depth target.
    g_steps = pl.cdiv(G, gb)
    if g_steps > 2 and g_steps % 2 == 1:
        for cand in (gb - 8, gb - 16, gb + 8, gb + 16):
            if cand < 8 or cand > budget_gb:
                continue
            cand_steps = pl.cdiv(G, cand)
            if cand_steps % 2 == 0 and cand_steps >= min(desired_steps, 4):
                gb = cand
                break
    return gb, nt, n_steps


def weight_and_sum(feats, weight, bias):
    """feats: [G, N, D]; weight: [D, 1]; bias: [1].

    Returns (h_g_sum [G, D], atom_weights [G*N, 1]) matching the PyTorch module."""
    G, N, D = feats.shape
    itemsize = jnp.dtype(feats.dtype).itemsize

    gb, nt, n_steps = _choose_tiling(G, N, D, itemsize)
    g_steps = pl.cdiv(G, gb)

    # Lane-dense (1, D) weight row in the feats dtype; scalar bias for SMEM.
    w_row = weight.reshape(1, D).astype(feats.dtype)
    b_smem = bias.reshape(1, 1).astype(jnp.float32)

    # VMEM accounting: double-buffered in/out blocks + f32 accumulator + in-kernel
    # intermediates (gated product / f32-accumulated reduces). Never clamp below need.
    feats_blk = gb * nt * D * itemsize
    hsum_blk = gb * D * itemsize
    aw_blk = gb * nt * 4
    inter = 2 * gb * nt * D * 4 + 2 * gb * nt * 4
    acc_bytes = gb * D * 4
    vmem_need = 2 * (feats_blk + hsum_blk + aw_blk + D * itemsize) \
        + acc_bytes + inter + (2 << 20)
    try:
        vmem_cap = int(pltpu.get_tpu_info().vmem_capacity_bytes)
    except Exception:
        vmem_cap = 64 << 20  # smallest physical VMEM across current gens (v7x)
    vmem_limit = int(min(max(vmem_need, 16 << 20), vmem_cap))

    cost = pl.CostEstimate(
        flops=4 * G * N * D,
        transcendentals=G * N,
        bytes_accessed=G * N * D * itemsize + G * D * itemsize + G * N * 4 + D * itemsize,
    )

    h_g_sum, aw = pl.pallas_call(
        _make_kernel(nt, N, n_steps),
        out_shape=(
            jax.ShapeDtypeStruct((G, D), feats.dtype),
            jax.ShapeDtypeStruct((G, N), jnp.float32),
        ),
        grid_spec=pltpu.PrefetchScalarGridSpec(
            num_scalar_prefetch=0,
            grid=(g_steps, n_steps),
            in_specs=[
                pl.BlockSpec((gb, nt, D), lambda g, n: (g, n, 0)),       # feats slab
                pl.BlockSpec((1, D), lambda g, n: (0, 0)),               # shared weight
                pl.BlockSpec(memory_space=pltpu.MemorySpace.SMEM),       # bias scalar
            ],
            out_specs=[
                pl.BlockSpec((gb, D), lambda g, n: (g, 0)),              # h_g_sum
                pl.BlockSpec((gb, nt), lambda g, n: (g, n)),             # atom scores
            ],
            scratch_shapes=[pltpu.VMEM((gb, D), jnp.float32)],
        ),
        compiler_params=pltpu.CompilerParams(
            dimension_semantics=("parallel", "arbitrary"),
            vmem_limit_bytes=vmem_limit,
        ),
        cost_estimate=cost,
    )(feats, w_row, b_smem)

    # Flattened [num_nodes, 1] to match the PyTorch module's atom_weights.
    atom_weights = aw.reshape(G * N, 1)
    return h_g_sum, atom_weights


def _reference(feats, weight, bias):
    scores = jnp.einsum("gnd,do->gno", feats.astype(jnp.float32),
                        weight.astype(jnp.float32)) + bias.astype(jnp.float32)  # (G,N,1)
    gates = jax.nn.sigmoid(scores)
    h_g_sum = jnp.sum(gates * feats, axis=1).astype(feats.dtype)                # (G, D)
    return h_g_sum, scores.reshape(-1, 1)


if __name__ == "__main__":
    G, N, D = 20, 8, 32  # 20 graphs, 8 nodes each, in_feats=32 (exercises edge block)

    key = jax.random.PRNGKey(0)
    k_feats, k_w, k_b = jax.random.split(key, 3)

    feats = jax.random.normal(k_feats, (G, N, D), dtype=jnp.float32)
    # Deterministic "Linear(in_feats, 1)" parameters (synthetic init).
    lin_w = jax.random.normal(k_w, (D, 1), dtype=jnp.float32) * (1.0 / jnp.sqrt(D))
    lin_b = jax.random.normal(k_b, (1,), dtype=jnp.float32) * 0.1

    h_g_sum, atom_weights = weight_and_sum(feats, lin_w, lin_b)
    jax.block_until_ready((h_g_sum, atom_weights))

    ref_sum, ref_aw = _reference(feats, lin_w, lin_b)
    assert h_g_sum.shape == (G, D)
    assert atom_weights.shape == (G * N, 1)
    assert jnp.allclose(h_g_sum, ref_sum, atol=1e-5, rtol=1e-5)
    assert jnp.allclose(atom_weights, ref_aw, atol=1e-5, rtol=1e-5)

    print("KERNEL_OK")
</pallas_src>

<mosaic_0001>
module attributes {stable_mosaic.version = 11 : i64} {
  func.func @kernel(%arg0: i32, %arg1: i32, %arg2: memref<8x8x32xf32, #tpu.memory_space<vmem>>, %arg3: memref<1x32xf32, #tpu.memory_space<vmem>>, %arg4: memref<1x1xf32, #tpu.memory_space<smem>>, %arg5: memref<8x32xf32, #tpu.memory_space<vmem>>, %arg6: memref<8x8xf32, #tpu.memory_space<vmem>>, %arg7: memref<8x32xf32, #tpu.memory_space<vmem>>) attributes {dimension_semantics = [#tpu.dimension_semantics<parallel>, #tpu.dimension_semantics<arbitrary>], iteration_bounds = array<i64: 3, 1>, scalar_prefetch = 0 : i64, scratch_operands = 1 : i64, tpu.core_type = #tpu.core_type<tc>, window_params = [{transform_indices = @transform_0, window_bounds = array<i64: 8, 8, 32>}, {pipeline_mode = #tpu.pipeline_mode<synchronous>, transform_indices = @transform_1, window_bounds = array<i64: 1, 32>}, {transform_indices = @transform_2, window_bounds = array<i64: 1, 1>}, {transform_indices = @transform_3, window_bounds = array<i64: 8, 32>}, {transform_indices = @transform_4, window_bounds = array<i64: 8, 8>}]} {
    %c0_i32 = arith.constant 0 : i32
    %0 = arith.cmpi eq, %arg1, %c0_i32 : i32
    %1 = arith.extui %0 : i1 to i32
    %c0_i32_0 = arith.constant 0 : i32
    %2 = arith.cmpi ne, %1, %c0_i32_0 : i32
    scf.if %2 {
      %cst_17 = arith.constant 0.000000e+00 : f32
      %28 = vector.broadcast %cst_17 : f32 to vector<8x32xf32>
      %c0_18 = arith.constant 0 : index
      %c0_19 = arith.constant 0 : index
      %29 = vector.load %arg7[%c0_18, %c0_19] : memref<8x32xf32, #tpu.memory_space<vmem>>, vector<8x32xf32>
      tpu.vector_store %arg7[%c0_18, %c0_19], %28 {strides = array<i32>} : memref<8x32xf32, #tpu.memory_space<vmem>>, vector<8x32xf32>,
    } else {
    }
    %c0 = arith.constant 0 : index
    %c0_1 = arith.constant 0 : index
    %c0_2 = arith.constant 0 : index
    %3 = vector.load %arg2[%c0, %c0_1, %c0_2] : memref<8x8x32xf32, #tpu.memory_space<vmem>>, vector<8x8x32xf32>
    %c0_3 = arith.constant 0 : index
    %c0_4 = arith.constant 0 : index
    %4 = vector.load %arg3[%c0_3, %c0_4] : memref<1x32xf32, #tpu.memory_space<vmem>>, vector<1x32xf32>
    %c0_5 = arith.constant 0 : index
    %c0_6 = arith.constant 0 : index
    %5 = memref.load %arg4[%c0_5, %c0_6] : memref<1x1xf32, #tpu.memory_space<smem>>
    %6 = vector.shape_cast %4 : vector<1x32xf32> to vector<1x1x32xf32>
    %7 = vector.broadcast %6 : vector<1x1x32xf32> to vector<8x8x32xf32>
    %8 = arith.mulf %3, %7 : vector<8x8x32xf32>
    %cst = arith.constant dense<0.000000e+00> : vector<8x8xf32>
    %9 = vector.multi_reduction <add>, %8, %cst [2] : vector<8x8x32xf32> to vector<8x8xf32>
    %10 = vector.broadcast %5 : f32 to vector<8x8xf32>
    %11 = arith.addf %9, %10 : vector<8x8xf32>
    %12 = arith.negf %11 : vector<8x8xf32>
    %13 = math.exp %12 : vector<8x8xf32>
    %cst_7 = arith.constant 1.000000e+00 : f32
    %14 = vector.broadcast %cst_7 : f32 to vector<8x8xf32>
    %15 = arith.addf %14, %13 : vector<8x8xf32>
    %16 = arith.divf %14, %15 : vector<8x8xf32>
    %17 = vector.shape_cast %16 : vector<8x8xf32> to vector<8x8x1xf32>
    %18 = vector.broadcast %17 : vector<8x8x1xf32> to vector<8x8x32xf32>
    %19 = arith.mulf %18, %3 : vector<8x8x32xf32>
    %c0_8 = arith.constant 0 : index
    %c0_9 = arith.constant 0 : index
    %20 = vector.load %arg7[%c0_8, %c0_9] : memref<8x32xf32, #tpu.memory_space<vmem>>, vector<8x32xf32>
    %cst_10 = arith.constant dense<0.000000e+00> : vector<8x32xf32>
    %21 = vector.multi_reduction <add>, %19, %cst_10 [1] : vector<8x8x32xf32> to vector<8x32xf32>
    %22 = arith.addf %20, %21 : vector<8x32xf32>
    %c0_11 = arith.constant 0 : index
    %c0_12 = arith.constant 0 : index
    %23 = vector.load %arg7[%c0_11, %c0_12] : memref<8x32xf32, #tpu.memory_space<vmem>>, vector<8x32xf32>
    tpu.vector_store %arg7[%c0_11, %c0_12], %22 {strides = array<i32>} : memref<8x32xf32, #tpu.memory_space<vmem>>, vector<8x32xf32>,
    %c0_13 = arith.constant 0 : index
    %c0_14 = arith.constant 0 : index
    %24 = vector.load %arg6[%c0_13, %c0_14] : memref<8x8xf32, #tpu.memory_space<vmem>>, vector<8x8xf32>
    tpu.vector_store %arg6[%c0_13, %c0_14], %11 {strides = array<i32>} : memref<8x8xf32, #tpu.memory_space<vmem>>, vector<8x8xf32>,
    %c0_i32_15 = arith.constant 0 : i32
    %25 = arith.cmpi eq, %arg1, %c0_i32_15 : i32
    %26 = arith.extui %25 : i1 to i32
    %c0_i32_16 = arith.constant 0 : i32
    %27 = arith.cmpi ne, %26, %c0_i32_16 : i32
    scf.if %27 {
      %c0_17 = arith.constant 0 : index
      %c0_18 = arith.constant 0 : index
      %28 = vector.load %arg7[%c0_17, %c0_18] : memref<8x32xf32, #tpu.memory_space<vmem>>, vector<8x32xf32>
      %c0_19 = arith.constant 0 : index
      %c0_20 = arith.constant 0 : index
      %29 = vector.load %arg5[%c0_19, %c0_20] : memref<8x32xf32, #tpu.memory_space<vmem>>, vector<8x32xf32>
      tpu.vector_store %arg5[%c0_19, %c0_20], %28 {strides = array<i32>} : memref<8x32xf32, #tpu.memory_space<vmem>>, vector<8x32xf32>,
    } else {
    }
    return
  }
  func.func @transform_0(%arg0: i32, %arg1: i32) -> (i32, i32, i32) {
    %c0_i32 = arith.constant 0 : i32
    %c0_i32_0 = arith.constant 0 : i32
    return %arg0, %arg1, %c0_i32 : i32, i32, i32
  }
  func.func @transform_1(%arg0: i32, %arg1: i32) -> (i32, i32) {
    %c0_i32 = arith.constant 0 : i32
    %c0_i32_0 = arith.constant 0 : i32
    %c0_i32_1 = arith.constant 0 : i32
    return %c0_i32, %c0_i32_0 : i32, i32
  }
  func.func @transform_2(%arg0: i32, %arg1: i32) -> (i32, i32) {
    %c0_i32 = arith.constant 0 : i32
    %c0_i32_0 = arith.constant 0 : i32
    %c0_i32_1 = arith.constant 0 : i32
    return %c0_i32, %c0_i32_0 : i32, i32
  }
  func.func @transform_3(%arg0: i32, %arg1: i32) -> (i32, i32) {
    %c0_i32 = arith.constant 0 : i32
    %c0_i32_0 = arith.constant 0 : i32
    return %arg0, %c0_i32 : i32, i32
  }
  func.func @transform_4(%arg0: i32, %arg1: i32) -> (i32, i32) {
    %c0_i32 = arith.constant 0 : i32
    return %arg0, %arg1 : i32, i32
  }
}

</mosaic_0001>

<llo_original>
// kernel: tpu_custom_call.1
$region0: #{tpu_custom_call.1}
  #allocation0 [shape = 'u32[]', space=smem, size = 0x4, offset = 0x4, fixed_abs, tag = 'smem constant byte address 0x4 - core index']
  #allocation1 [shape = 'u32[144,128]{1,0:T(1,128)}', space=vmem, size = 0x12000, scoped, tag = 'internal scratch']
  #allocation2 [shape = 'f32[8,32]{1,0:T(8,128)}', space=vmem, size = 0x1000, scoped, tag = 'scratch operand']
  #allocation3 [shape = 'f32[1,1]{1,0:T(1,128)S(6)}', space=smem, size = 0x200, scoped, tag = 'scoped memory for tpu_custom_call.1']
  %s0 = inlined_call_operand.hbm [shape: f32[20,8,32], index: 0, kind: input, shape index: {}]
  %s1 = inlined_call_operand.vmem [shape: f32[1,32], index: 1, kind: input, shape index: {}]
  %s2 = inlined_call_operand.<no memory space> [shape: f32[1,1], index: 2, kind: input, shape index: {}]
  %s3 = inlined_call_operand.hbm [shape: f32[20,32], index: 3, kind: output, shape index: {0}]
  %s4 = inlined_call_operand.vmem [shape: f32[20,8], index: 4, kind: output, shape index: {1}]
  %5 = xla_tuple %s3, %s4
  %s6 = sld [smem:[#allocation0]]
  $region65: #{tpu_custom_call.1} parent=0
    _
  %s8 = ssub.s32 1, %s6
  %s9 = scalar_select 0, %s8, %s6
  %10 = sst [smem:[#allocation3]] %s2
  $region1: #{tpu_custom_call.1} parent=0
    #allocation4 [shape = 'u8[65536]{0}', space=vmem, size = 0x10000, scoped, tag = 'input window, operand 0']
    #allocation5 [shape = 's32[2]{0}', space=sflag, size = 0x8, scoped, tag = 'scoped memory for tpu_custom_call.1']
    #allocation6 [shape = 's32[2]{0}', space=sflag, size = 0x8, scoped, tag = 'scoped memory for tpu_custom_call.1']
    #allocation7 [shape = 'u8[8192]{0}', space=vmem, size = 0x2000, scoped, tag = 'output window, operand 0']
    %11 = vsyncpa [#allocation5], 0
    %s12 = scalar_lea.sflag [#allocation5], 1
    %13 = vsyncpa %s12, 0
    %14 = vsyncpa [#allocation6], 0
    %s15 = scalar_lea.sflag [#allocation6], 1
    %16 = vsyncpa %s15, 0
    loop: start=0, step=1, limit=5
    $region2: #{tpu_custom_call.1} parent=1 // loop_pre_header
      _
    $region3: #{tpu_custom_call.1} parent=1 // loop_header
      %s18 = sphi 0, %s22
      %p19 = scmp.ge.s32.totalorder %s18, 5
      %s25 = sphi 0, %s37
      %s26 = sphi 0, %s33
      %s27 = sphi 0, %s25
      %s28 = sphi 0, %s26
      %s29 = sphi 0, %s27
      %s30 = sphi 0, %s28
      %s42 = sphi 0, %s44
      %s45 = sphi 0, %s42
      %s46 = sphi 0, %s45
      %s62 = sphi 0, %s46
      %s66 = sphi 0, %s66
      %s68 = sphi 0, %s66
      %s69 = sphi 0, %s68
      %s83 = sphi 0, %s69
      %s87 = sphi 0, %s87
      %s89 = sphi 0, %s87
      %s90 = sphi 0, %s89
      %s104 = sphi 0, %s90
      %s110 = sphi 0, %s112
      %s113 = sphi 0, %s110
      %s114 = sphi 0, %s113
      %s130 = sphi 0, %s114
      %s138 = sphi 0, %s140
      %s141 = sphi 0, %s138
      %s142 = sphi 0, %s141
      %s158 = sphi 0, %s142
    $region4: #{tpu_custom_call.1} parent=1 // loop_header_branch
      %21 = sbr.rel (%p19) target = $region8
    $region5: #{tpu_custom_call.1} parent=1 // loop_body
      %s23 = ssub.s32 %s18, 1
      %s24 = ssub.s32 %s18, 2
      %s31 = sadd.s32 1, %s26
      %p32 = scmp.ge.s32.totalorder %s31, 1
      %s33 = scalar_select %p32, 0, %s31
      %s34 = sadd.s32 1, %s25
      %s35 = scalar_select %p32, %s34, %s25
      %p36 = scmp.ge.s32.totalorder %s35, 3
      %s37 = scalar_select %p36, 0, %s35
      %s38 = ssub.s32 %s25, %s37
      %s39 = ssub.s32 %s26, %s33
      %s40 = sor.u32 %s38, %s39
      %p41 = scmp.eq.s32.totalorder %s40, 0
      %s43 = sadd.s32 %s42, 1
      %s44 = scalar_select %p41, %s42, %s43
      %p47 = pneg %p41
      %p48 = scmp.eq.s32.totalorder %s18, 2
      %p49 = por %p47, %p48
      %p50 = scmp.ne.s32.totalorder %s42, %s45
      %p51 = scmp.eq.s32.totalorder %s18, 0
      %p52 = por %p50, %p51
      %p53 = scmp.ne.s32.totalorder %s42, %s45
      %p54 = scmp.eq.s32.totalorder %s23, 2
      %p55 = por %p53, %p54
      %p56 = scmp.ne.s32.totalorder %s45, %s46
      %p57 = scmp.eq.s32.totalorder %s23, 0
      %p58 = por %p56, %p57
      %p59 = scmp.ne.s32.totalorder %s45, %s46
      %p60 = scmp.eq.s32.totalorder %s24, 2
      %p61 = por %p59, %p60
      %p63 = scmp.ne.s32.totalorder %s46, %s62
      %p64 = scmp.eq.s32.totalorder %s24, 0
      %p65 = por %p63, %p64
      %s67 = sadd.s32 %s66, 1
      %p70 = scmp.eq.s32.totalorder %s18, 2
      %p71 = scmp.ne.s32.totalorder %s66, %s68
      %p72 = scmp.eq.s32.totalorder %s18, 0
      %p73 = por %p71, %p72
      %p74 = scmp.ne.s32.totalorder %s66, %s68
      %p75 = scmp.eq.s32.totalorder %s23, 2
      %p76 = por %p74, %p75
      %p77 = scmp.ne.s32.totalorder %s68, %s69
      %p78 = scmp.eq.s32.totalorder %s23, 0
      %p79 = por %p77, %p78
      %p80 = scmp.ne.s32.totalorder %s68, %s69
      %p81 = scmp.eq.s32.totalorder %s24, 2
      %p82 = por %p80, %p81
      %p84 = scmp.ne.s32.totalorder %s69, %s83
      %p85 = scmp.eq.s32.totalorder %s24, 0
      %p86 = por %p84, %p85
      %s88 = sadd.s32 %s87, 1
      %p91 = scmp.eq.s32.totalorder %s18, 2
      %p92 = scmp.ne.s32.totalorder %s87, %s89
      %p93 = scmp.eq.s32.totalorder %s18, 0
      %p94 = por %p92, %p93
      %p95 = scmp.ne.s32.totalorder %s87, %s89
      %p96 = scmp.eq.s32.totalorder %s23, 2
      %p97 = por %p95, %p96
      %p98 = scmp.ne.s32.totalorder %s89, %s90
      %p99 = scmp.eq.s32.totalorder %s23, 0
      %p100 = por %p98, %p99
      %p101 = scmp.ne.s32.totalorder %s89, %s90
      %p102 = scmp.eq.s32.totalorder %s24, 2
      %p103 = por %p101, %p102
      %p105 = scmp.ne.s32.totalorder %s90, %s104
      %p106 = scmp.eq.s32.totalorder %s24, 0
      %p107 = por %p105, %p106
      %s108 = ssub.s32 %s25, %s37
      %p109 = scmp.eq.s32.totalorder %s108, 0
      %s111 = sadd.s32 %s110, 1
      %s112 = scalar_select %p109, %s110, %s111
      %p115 = pneg %p109
      %p116 = scmp.eq.s32.totalorder %s18, 2
      %p117 = por %p115, %p116
      %p118 = scmp.ne.s32.totalorder %s110, %s113
      %p119 = scmp.eq.s32.totalorder %s18, 0
      %p120 = por %p118, %p119
      %p121 = scmp.ne.s32.totalorder %s110, %s113
      %p122 = scmp.eq.s32.totalorder %s23, 2
      %p123 = por %p121, %p122
      %p124 = scmp.ne.s32.totalorder %s113, %s114
      %p125 = scmp.eq.s32.totalorder %s23, 0
      %p126 = por %p124, %p125
      %p127 = scmp.ne.s32.totalorder %s113, %s114
      %p128 = scmp.eq.s32.totalorder %s24, 2
      %p129 = por %p127, %p128
      %p131 = scmp.ne.s32.totalorder %s114, %s130
      %p132 = scmp.eq.s32.totalorder %s24, 0
      %p133 = por %p131, %p132
      %s134 = ssub.s32 %s25, %s37
      %s135 = ssub.s32 %s26, %s33
      %s136 = sor.u32 %s134, %s135
      %p137 = scmp.eq.s32.totalorder %s136, 0
      %s139 = sadd.s32 %s138, 1
      %s140 = scalar_select %p137, %s138, %s139
      %p143 = pneg %p137
      %p144 = scmp.eq.s32.totalorder %s18, 2
      %p145 = por %p143, %p144
      %p146 = scmp.ne.s32.totalorder %s138, %s141
      %p147 = scmp.eq.s32.totalorder %s18, 0
      %p148 = por %p146, %p147
      %p149 = scmp.ne.s32.totalorder %s138, %s141
      %p150 = scmp.eq.s32.totalorder %s23, 2
      %p151 = por %p149, %p150
      %p152 = scmp.ne.s32.totalorder %s141, %s142
      %p153 = scmp.eq.s32.totalorder %s23, 0
      %p154 = por %p152, %p153
      %p155 = scmp.ne.s32.totalorder %s141, %s142
      %p156 = scmp.eq.s32.totalorder %s24, 2
      %p157 = por %p155, %p156
      %p159 = scmp.ne.s32.totalorder %s142, %s158
      %p160 = scmp.eq.s32.totalorder %s24, 0
      %p161 = por %p159, %p160
      %p162 = scmp.le.s32.totalorder 1, %s18
      %p163 = scmp.lt.s32.totalorder %s18, 4
      %p164 = pnand %p162, %p163
      %p165 = pneg %p164
      // Predicated region
      $region9: #{tpu_custom_call.1} parent=5 // pred_check
        _
      $region10: #{tpu_custom_call.1} parent=5 // pred_check_branch
        %167 = sbr.rel (%p164) target = $region12
      $region11: #{tpu_custom_call.1} parent=5 // pred_region
        %s168 = ssub.s32 %s18, 1
        // Predicated region
        $region13: #{tpu_custom_call.1} parent=11 // pred_check
          %p169 = pneg %p79
        $region14: #{tpu_custom_call.1} parent=11 // pred_check_branch
          %171 = sbr.rel (%p169) target = $region16
        $region15: #{tpu_custom_call.1} parent=11 // pred_region
          _
        $region16: #{tpu_custom_call.1} parent=11 // pred_fallthru
          _
        // Predicated region
        $region17: #{tpu_custom_call.1} parent=11 // pred_check
          %p172 = pneg %p100
        $region18: #{tpu_custom_call.1} parent=11 // pred_check_branch
          %174 = sbr.rel (%p172) target = $region20
        $region19: #{tpu_custom_call.1} parent=11 // pred_region
          _
        $region20: #{tpu_custom_call.1} parent=11 // pred_fallthru
          _
      $region12: #{tpu_custom_call.1} parent=5 // pred_fallthru
        _
      %p175 = scmp.lt.s32.totalorder %s18, 3
      // Predicated region
      $region21: #{tpu_custom_call.1} parent=5 // pred_check
        %p176 = pneg %p175
      $region22: #{tpu_custom_call.1} parent=5 // pred_check_branch
        %178 = sbr.rel (%p176) target = $region24
      $region23: #{tpu_custom_call.1} parent=5 // pred_region
        // Predicated region
        $region25: #{tpu_custom_call.1} parent=23 // pred_check
          %p179 = pneg %p52
        $region26: #{tpu_custom_call.1} parent=23 // pred_check_branch
          %181 = sbr.rel (%p179) target = $region28
        $region27: #{tpu_custom_call.1} parent=23 // pred_region
          %s182 = sand.u32 %s42, 1
          %s183 = scalar_lea.sflag [#allocation5], %s182
          %s184 = sand.u32 %s42, 1
          %s185 = smul.addr %s184, 64
          %s186 = scalar_lea.vmem [#allocation4], %s185
          %s187 = smul.u32 8, %s25
          %s188 = ssub.s32 20, %s187
          %p189 = scmp.lt.s32.totalorder %s188, 8
          %s190 = scalar_select %p189, %s188, 8
          %s191 = smul.u32 128, %s190
          %s193 = ssub.s32 1024, %s191
          %194 = vsyncadd %s183, %s193
          %p195 = scmp.ne.s32.totalorder 0, %s191
          %s196 = sadd.s32 %s26, %s187
          %s197 = smul.addr %s196, 128
          %s198 = scalar_lea.hbm %s0, %s197
          %s199 = smul.u32 8, %s190
          %s200 = sshll.u32 %s186, 4
          %s201 = int_to_ptr.vmem [resolvable:$true] %s200
          %s202 = sshll.u32 %s199, 4
          %206 = dma.hbm_to_vmem [thread:$0]  (%p195), %s198, %s202, %s201, %s183, 128, 128, 8
        $region28: #{tpu_custom_call.1} parent=23 // pred_fallthru
          _
      $region24: #{tpu_custom_call.1} parent=5 // pred_fallthru
        _
      %p207 = scmp.le.s32.totalorder 1, %s18
      %p208 = scmp.lt.s32.totalorder %s18, 4
      %p209 = pnand %p207, %p208
      %p210 = pneg %p209
      // Predicated region
      $region29: #{tpu_custom_call.1} parent=5 // pred_check
        _
      $region30: #{tpu_custom_call.1} parent=5 // pred_check_branch
        %212 = sbr.rel (%p209) target = $region32
      $region31: #{tpu_custom_call.1} parent=5 // pred_region
        %s213 = ssub.s32 %s18, 1
        %s214 = sand.u32 %s45, 1
        %s215 = scalar_lea.sflag [#allocation5], %s214
        %s216 = sand.u32 %s45, 1
        %s217 = smul.addr %s216, 64
        %s218 = scalar_lea.vmem [#allocation4], %s217
        // Predicated region
        $region33: #{tpu_custom_call.1} parent=31 // pred_check
          %p219 = pneg %p58
        $region34: #{tpu_custom_call.1} parent=31 // pred_check_branch
          %221 = sbr.rel (%p219) target = $region36
        $region35: #{tpu_custom_call.1} parent=31 // pred_region
          %222 = dma.done %s215, 1024
        $region36: #{tpu_custom_call.1} parent=31 // pred_fallthru
          _
        %s223 = sand.u32 %s45, 1
        %s224 = scalar_lea.sflag [#allocation5], %s223
        %s225 = sand.u32 %s45, 1
        %s226 = smul.addr %s225, 64
        %s227 = scalar_lea.vmem [#allocation4], %s226
        %p228 = pneg %p58
        %p229 = pneg %p55
        %p230 = pneg %p79
        %p231 = pneg %p76
        %p232 = pneg %p100
        %p233 = pneg %p97
        %p234 = pneg %p126
        %p235 = pneg %p123
        %s236 = sand.u32 %s113, 1
        %s237 = scalar_lea.sflag [#allocation6], %s236
        %s238 = sand.u32 %s113, 1
        %s239 = smul.addr %s238, 8
        %s240 = scalar_lea.vmem [#allocation7], %s239
        %p241 = pneg %p154
        %p242 = pneg %p151
        %p243 = scmp.lt.s32.totalorder %s27, 2
        %s244 = scalar_select %p243, %s27, 2
        %p245 = scmp.lt.s32.totalorder %s28, 0
        %s246 = scalar_select %p245, %s28, 0
        %s247 = sadd.s32 %s246, %s244
        %s248 = smul.addr %s247, 8
        %s249 = scalar_lea.vmem %s4, %s248
        %s250 = smul.u32 8, %s27
        %s251 = ssub.s32 20, %s250
        %p252 = scmp.lt.s32.totalorder %s251, 8
        %s253 = scalar_select %p252, %s251, 8
        %s254 = smul.u32 128, %s253
        %p255 = scmp.lt.s32.totalorder %s27, 2
        %s256 = scalar_select %p255, %s27, 2
        %p257 = scmp.lt.s32.totalorder %s28, 0
        %s258 = scalar_select %p257, %s28, 0
        %s259 = sadd.s32 %s258, %s256
        %s260 = smul.addr %s259, 8
        %s261 = scalar_lea.vmem %s4, %s260
        %p262 = scmp.eq.s32.totalorder %s28, 0
        // Predicated region
        $region37: #{tpu_custom_call.1} parent=31 // pred_check
          %p263 = pneg %p262
        $region38: #{tpu_custom_call.1} parent=31 // pred_check_branch
          %265 = sbr.rel (%p263) target = $region40
        $region39: #{tpu_custom_call.1} parent=31 // pred_region
          %vm266 = vcmask 261120
          %267 = vst.msk [vmem:[#allocation2] sm:$0xff] %vm266, 0.0
        $region40: #{tpu_custom_call.1} parent=31 // pred_fallthru
          _
        %v268 = vld [vmem:[%s218] sm:$0xff]
        %v269 = vld [vmem:[%s218 + $0x8] sm:$0xff]
        %v270 = vld [vmem:[%s218 + $0x10] sm:$0xff]
        %v271 = vld [vmem:[%s218 + $0x18] sm:$0xff]
        %v272 = vld [vmem:[%s218 + $0x20] sm:$0xff]
        %v273 = vld [vmem:[%s218 + $0x28] sm:$0xff]
        %v274 = vld [vmem:[%s218 + $0x30] sm:$0xff]
        %v275 = vld [vmem:[%s218 + $0x38] sm:$0xff]
        %v276 = vld [vmem:[%s1] sm:$0x1]
        %s277 = sld [smem:[#allocation3]]
        %v279 = vlaneseq
        %v280 = vshrl.u32 %v279, 7
        %v281 = vsub.s32 0, %v280
        %v282 = vrot.slane %v276, %v281
        %v284 = vmul.f32 %v268, %v282
        %v285 = vmul.f32 %v269, %v282
        %v286 = vmul.f32 %v270, %v282
        %v287 = vmul.f32 %v271, %v282
        %v288 = vmul.f32 %v272, %v282
        %v289 = vmul.f32 %v273, %v282
        %v290 = vmul.f32 %v274, %v282
        %v291 = vmul.f32 %v275, %v282
        %vm292 = vcmask 261120
        %v293 = vsel %vm292, %v284, 0.0
        %294 = vadd.xlane.f32.xlu0 %v293
        %v295 = vpop.xlane.xlu0 %294
        %v296 = vsel %vm292, %v285, 0.0
        %297 = vadd.xlane.f32.xlu0 %v296
        %v298 = vpop.xlane.xlu0 %297
        %v299 = vsel %vm292, %v286, 0.0
        %300 = vadd.xlane.f32.xlu0 %v299
        %v301 = vpop.xlane.xlu0 %300
        %v302 = vsel %vm292, %v287, 0.0
        %303 = vadd.xlane.f32.xlu0 %v302
        %v304 = vpop.xlane.xlu0 %303
        %v305 = vsel %vm292, %v288, 0.0
        %306 = vadd.xlane.f32.xlu0 %v305
        %v307 = vpop.xlane.xlu0 %306
        %v308 = vsel %vm292, %v289, 0.0
        %309 = vadd.xlane.f32.xlu0 %v308
        %v310 = vpop.xlane.xlu0 %309
        %v311 = vsel %vm292, %v290, 0.0
        %312 = vadd.xlane.f32.xlu0 %v311
        %v313 = vpop.xlane.xlu0 %312
        %v314 = vsel %vm292, %v291, 0.0
        %315 = vadd.xlane.f32.xlu0 %v314
        %v316 = vpop.xlane.xlu0 %315
        %v317 = vstv %s277
        %v318 = vadd.f32 %v295, %v317
        %v319 = vadd.f32 %v298, %v317
        %v320 = vadd.f32 %v301, %v317
        %v321 = vadd.f32 %v304, %v317
        %v322 = vadd.f32 %v307, %v317
        %v323 = vadd.f32 %v310, %v317
        %v324 = vadd.f32 %v313, %v317
        %v325 = vadd.f32 %v316, %v317
        %v326 = vxor.u32 %v318, 2147483648
        %v327 = vxor.u32 %v319, 2147483648
        %v328 = vxor.u32 %v320, 2147483648
        %v329 = vxor.u32 %v321, 2147483648
        %v330 = vxor.u32 %v322, 2147483648
        %v331 = vxor.u32 %v323, 2147483648
        %v332 = vxor.u32 %v324, 2147483648
        %v333 = vxor.u32 %v325, 2147483648
        %v334 = vmul.f32 %v326, 1.442695
        %v335 = vpow.pop %v334
        %v336 = vmul.f32 %v327, 1.442695
        %v337 = vpow.pop %v336
        %v338 = vmul.f32 %v328, 1.442695
        %v339 = vpow.pop %v338
        %v340 = vmul.f32 %v329, 1.442695
        %v341 = vpow.pop %v340
        %v342 = vmul.f32 %v330, 1.442695
        %v343 = vpow.pop %v342
        %v344 = vmul.f32 %v331, 1.442695
        %v345 = vpow.pop %v344
        %v346 = vmul.f32 %v332, 1.442695
        %v347 = vpow.pop %v346
        %v348 = vmul.f32 %v333, 1.442695
        %v349 = vpow.pop %v348
        %v350 = vadd.f32 %v335, 1.0
        %v351 = vadd.f32 %v337, 1.0
        %v352 = vadd.f32 %v339, 1.0
        %v353 = vadd.f32 %v341, 1.0
        %v354 = vadd.f32 %v343, 1.0
        %v355 = vadd.f32 %v345, 1.0
        %v356 = vadd.f32 %v347, 1.0
        %v357 = vadd.f32 %v349, 1.0
        %v358 = vrcp.pop %v350
        %v359 = vmul.f32 1.0, %v358
        %v360 = vrcp.pop %v351
        %v361 = vmul.f32 1.0, %v360
        %v362 = vrcp.pop %v352
        %v363 = vmul.f32 1.0, %v362
        %v364 = vrcp.pop %v353
        %v365 = vmul.f32 1.0, %v364
        %v366 = vrcp.pop %v354
        %v367 = vmul.f32 1.0, %v366
        %v368 = vrcp.pop %v355
        %v369 = vmul.f32 1.0, %v368
        %v370 = vrcp.pop %v356
        %v371 = vmul.f32 1.0, %v370
        %v372 = vrcp.pop %v357
        %v373 = vmul.f32 1.0, %v372
        %v374 = vmul.f32 %v359, %v268
        %v375 = vmul.f32 %v361, %v269
        %v376 = vmul.f32 %v363, %v270
        %v377 = vmul.f32 %v365, %v271
        %v378 = vmul.f32 %v367, %v272
        %v379 = vmul.f32 %v369, %v273
        %v380 = vmul.f32 %v371, %v274
        %v381 = vmul.f32 %v373, %v275
        %v382 = vld [vmem:[#allocation2] sm:$0xff]
        %v383 = vsel %vm292, %v374, 0.0
        %v384 = vrot.slane %v383, 4
        %v385 = vadd.f32 %v383, %v384
        %v386 = vrot.slane %v385, 2
        %v387 = vadd.f32 %v385, %v386
        %v388 = vrot.slane %v387, 1
        %v389 = vadd.f32 %v387, %v388
        %v390 = vsel %vm292, %v375, 0.0
        %v391 = vrot.slane %v390, 4
        %v392 = vadd.f32 %v390, %v391
        %v393 = vrot.slane %v392, 2
        %v394 = vadd.f32 %v392, %v393
        %v395 = vrot.slane %v394, 1
        %v396 = vadd.f32 %v394, %v395
        %v397 = vsel %vm292, %v376, 0.0
        %v398 = vrot.slane %v397, 4
        %v399 = vadd.f32 %v397, %v398
        %v400 = vrot.slane %v399, 2
        %v401 = vadd.f32 %v399, %v400
        %v402 = vrot.slane %v401, 1
        %v403 = vadd.f32 %v401, %v402
        %v404 = vsel %vm292, %v377, 0.0
        %v405 = vrot.slane %v404, 4
        %v406 = vadd.f32 %v404, %v405
        %v407 = vrot.slane %v406, 2
        %v408 = vadd.f32 %v406, %v407
        %v409 = vrot.slane %v408, 1
        %v410 = vadd.f32 %v408, %v409
        %v411 = vsel %vm292, %v378, 0.0
        %v412 = vrot.slane %v411, 4
        %v413 = vadd.f32 %v411, %v412
        %v414 = vrot.slane %v413, 2
        %v415 = vadd.f32 %v413, %v414
        %v416 = vrot.slane %v415, 1
        %v417 = vadd.f32 %v415, %v416
        %v418 = vsel %vm292, %v379, 0.0
        %v419 = vrot.slane %v418, 4
        %v420 = vadd.f32 %v418, %v419
        %v421 = vrot.slane %v420, 2
        %v422 = vadd.f32 %v420, %v421
        %v423 = vrot.slane %v422, 1
        %v424 = vadd.f32 %v422, %v423
        %v425 = vsel %vm292, %v380, 0.0
        %v426 = vrot.slane %v425, 4
        %v427 = vadd.f32 %v425, %v426
        %v428 = vrot.slane %v427, 2
        %v429 = vadd.f32 %v427, %v428
        %v430 = vrot.slane %v429, 1
        %v431 = vadd.f32 %v429, %v430
        %v432 = vsel %vm292, %v381, 0.0
        %v433 = vrot.slane %v432, 4
        %v434 = vadd.f32 %v432, %v433
        %v435 = vrot.slane %v434, 2
        %v436 = vadd.f32 %v434, %v435
        %v437 = vrot.slane %v436, 1
        %v438 = vadd.f32 %v436, %v437
        %vm447 = vcmask 1041409
        %v448 = vsel %vm447, %v396, %v389
        %vm449 = vcmask 1042434
        %v450 = vsel %vm449, %v403, %v448
        %vm451 = vcmask 1043459
        %v452 = vsel %vm451, %v410, %v450
        %vm453 = vcmask 1044484
        %v454 = vsel %vm453, %v417, %v452
        %vm455 = vcmask 1045509
        %v456 = vsel %vm455, %v424, %v454
        %vm457 = vcmask 1046534
        %v458 = vsel %vm457, %v431, %v456
        %vm459 = vcmask 1047559
        %v460 = vsel %vm459, %v438, %v458
        %v462 = vadd.f32 %v382, %v460
        %463 = vst.msk [vmem:[#allocation2] sm:$0xff] %vm292, %v462
        %v472 = vlaneseq
        %v473 = vand.u32 %v472, 127
        %v474 = vlaneseq
        %v475 = vshrl.u32 %v474, 7
        %v476 = vsub.s32 %v473, %v475
        %v477 = vrot.slane %v318, %v476
        %v478 = vlaneseq
        %v479 = vshrl.u32 %v478, 7
        %v480 = vsub.s32 %v473, %v479
        %v481 = vrot.slane %v319, %v480
        %v482 = vlaneseq
        %v483 = vshrl.u32 %v482, 7
        %v484 = vsub.s32 %v473, %v483
        %v485 = vrot.slane %v320, %v484
        %v486 = vlaneseq
        %v487 = vshrl.u32 %v486, 7
        %v488 = vsub.s32 %v473, %v487
        %v489 = vrot.slane %v321, %v488
        %v490 = vlaneseq
        %v491 = vshrl.u32 %v490, 7
        %v492 = vsub.s32 %v473, %v491
        %v493 = vrot.slane %v322, %v492
        %v494 = vlaneseq
        %v495 = vshrl.u32 %v494, 7
        %v496 = vsub.s32 %v473, %v495
        %v497 = vrot.slane %v323, %v496
        %v498 = vlaneseq
        %v499 = vshrl.u32 %v498, 7
        %v500 = vsub.s32 %v473, %v499
        %v501 = vrot.slane %v324, %v500
        %v502 = vlaneseq
        %v503 = vshrl.u32 %v502, 7
        %v504 = vsub.s32 %v473, %v503
        %v505 = vrot.slane %v325, %v504
        %v506 = vsel %vm447, %v481, %v477
        %v507 = vsel %vm449, %v485, %v506
        %v508 = vsel %vm451, %v489, %v507
        %v509 = vsel %vm453, %v493, %v508
        %v510 = vsel %vm455, %v497, %v509
        %v511 = vsel %vm457, %v501, %v510
        %v512 = vsel %vm459, %v505, %v511
        %vm514 = vcmask 64512
        %515 = vst.msk [vmem:[%s261] sm:$0xff] %vm514, %v512
        // Predicated region
        $region41: #{tpu_custom_call.1} parent=31 // pred_check
          %p516 = pneg %p262
        $region42: #{tpu_custom_call.1} parent=31 // pred_check_branch
          %518 = sbr.rel (%p516) target = $region44
        $region43: #{tpu_custom_call.1} parent=31 // pred_region
          %v519 = vld [vmem:[#allocation2] sm:$0xff]
          %520 = vst.msk [vmem:[%s240] sm:$0xff] %vm292, %v519
        $region44: #{tpu_custom_call.1} parent=31 // pred_fallthru
          _
        %s521 = sand.u32 %s113, 1
        %s522 = scalar_lea.sflag [#allocation6], %s521
        %s523 = sand.u32 %s113, 1
        %s524 = smul.addr %s523, 8
        %s525 = scalar_lea.vmem [#allocation7], %s524
        %p526 = scmp.lt.s32.totalorder %s27, 2
        %s527 = scalar_select %p526, %s27, 2
        %p528 = scmp.lt.s32.totalorder %s28, 0
        %s529 = scalar_select %p528, %s28, 0
        %s530 = sadd.s32 %s529, %s527
        %s531 = smul.addr %s530, 8
        %s532 = scalar_lea.vmem %s4, %s531
        // Predicated region
        $region45: #{tpu_custom_call.1} parent=31 // pred_check
          %p533 = pneg %p123
        $region46: #{tpu_custom_call.1} parent=31 // pred_check_branch
          %535 = sbr.rel (%p533) target = $region48
        $region47: #{tpu_custom_call.1} parent=31 // pred_region
          %s537 = ssub.s32 128, 128
          %538 = vsyncadd %s522, %s537
          %s539 = smul.addr %s27, 128
          %s540 = scalar_lea.hbm %s3, %s539
          %s542 = sshll.u32 %s525, 4
          %s543 = int_to_ptr.vmem [resolvable:$true] %s542
          %545 = dma.vmem_to_hbm [thread:$0]  %s543, 128, %s540, %s522
        $region48: #{tpu_custom_call.1} parent=31 // pred_fallthru
          _
        // Predicated region
        $region49: #{tpu_custom_call.1} parent=31 // pred_check
          %p546 = pneg %p151
        $region50: #{tpu_custom_call.1} parent=31 // pred_check_branch
          %548 = sbr.rel (%p546) target = $region52
        $region51: #{tpu_custom_call.1} parent=31 // pred_region
          _
        $region52: #{tpu_custom_call.1} parent=31 // pred_fallthru
          _
      $region32: #{tpu_custom_call.1} parent=5 // pred_fallthru
        _
      %p549 = scmp.le.s32.totalorder 2, %s18
      // Predicated region
      $region53: #{tpu_custom_call.1} parent=5 // pred_check
        %p550 = pneg %p549
      $region54: #{tpu_custom_call.1} parent=5 // pred_check_branch
        %552 = sbr.rel (%p550) target = $region56
      $region55: #{tpu_custom_call.1} parent=5 // pred_region
        %s553 = ssub.s32 %s18, 2
        // Predicated region
        $region57: #{tpu_custom_call.1} parent=55 // pred_check
          %p554 = pneg %p129
        $region58: #{tpu_custom_call.1} parent=55 // pred_check_branch
          %556 = sbr.rel (%p554) target = $region60
        $region59: #{tpu_custom_call.1} parent=55 // pred_region
          %s557 = sand.u32 %s114, 1
          %s558 = scalar_lea.sflag [#allocation6], %s557
          %s559 = sand.u32 %s114, 1
          %s560 = smul.addr %s559, 8
          %s561 = scalar_lea.vmem [#allocation7], %s560
          %562 = dma.done %s558, 128
        $region60: #{tpu_custom_call.1} parent=55 // pred_fallthru
          _
        // Predicated region
        $region61: #{tpu_custom_call.1} parent=55 // pred_check
          %p563 = pneg %p157
        $region62: #{tpu_custom_call.1} parent=55 // pred_check_branch
          %565 = sbr.rel (%p563) target = $region64
        $region63: #{tpu_custom_call.1} parent=55 // pred_region
          %p566 = scmp.lt.s32.totalorder %s29, 2
          %s567 = scalar_select %p566, %s29, 2
          %p568 = scmp.lt.s32.totalorder %s30, 0
          %s569 = scalar_select %p568, %s30, 0
          %s570 = sadd.s32 %s569, %s567
          %s571 = smul.addr %s570, 8
          %s572 = scalar_lea.vmem %s4, %s571
        $region64: #{tpu_custom_call.1} parent=55 // pred_fallthru
          _
      $region56: #{tpu_custom_call.1} parent=5 // pred_fallthru
        _
    $region6: #{tpu_custom_call.1} parent=1 // loop_footer
      %s22 = sadd.s32 1, %s18
    $region7: #{tpu_custom_call.1} parent=1 // loop_footer_branch
      %17 = sbr.rel target = $region3
    $region8: #{tpu_custom_call.1} parent=1 // loop_exit
      _
    %573 = vsyncpa [#allocation5], 1
    %s574 = scalar_lea.sflag [#allocation5], 1
    %575 = vsyncpa %s574, 1
    %576 = vsyncpa [#allocation6], 1
    %s577 = scalar_lea.sflag [#allocation6], 1
    %578 = vsyncpa %s577, 1

</llo_original>
